<compile_context>
chip_gen: v7x
topology: tpu7x:2x2x1
jax: 0.10.0
libtpu: 0.0.40
codegen_flags: <defaults>
</compile_context>

<pallas_src>
import functools
from math import sqrt

import jax
import jax.numpy as jnp
from jax import lax
from jax.experimental import pallas as pl
from jax.experimental.pallas import tpu as pltpu


def _l2mhsa_kernel(x_ref, wq_ref, xv_ref, o_ref, *, n_heads, d_head):
    """One grid step = one batch element; all heads processed in-kernel.

    x_ref : (S, H)        tokens for this batch element
    wq_ref: (H, H)        full Q projection (same block for every grid step)
    xv_ref: (n_heads, S)  precomputed X @ (Wh_h Wh_h^T Wv) per head
    o_ref : (n_heads, S)  sigmoid(applied), query index on the lane axis
    """
    scale = 1.0 / sqrt(d_head)
    x = x_ref[...]                                                  # (S, H)
    wq = wq_ref[...]                                                # (H, H)

    # One full-width Q projection for all heads (fills the MXU N dimension).
    q = jnp.dot(x, wq, preferred_element_type=jnp.float32)          # (S, H)

    cols = []
    for h in range(n_heads):                                        # static unroll
        qh = q[:, h * d_head:(h + 1) * d_head]                      # (S, dh)
        # q . q^T expressed as a contraction (no explicit .T feeding the MXU).
        qq = lax.dot_general(
            qh, qh,
            dimension_numbers=(((1,), (1,)), ((), ())),
            preferred_element_type=jnp.float32)                     # (S, S)
        n_col = jnp.sqrt(jnp.sum(qh * qh, axis=-1, keepdims=True))  # (S, 1)
        n_row = jnp.transpose(n_col)                                # (1, S)
        # -(||q_i|| - 2 q_i.q_j + ||q_j||) / sqrt(dh)
        scores = (2.0 * qq - n_col - n_row) * scale                 # (S, S)

        # Unnormalized softmax with the value vector folded into the row
        # reduction: applied_i = (sum_j e_ij * v_j) / (sum_j e_ij).
        m = jnp.max(scores, axis=-1, keepdims=True)                 # (S, 1)
        e = jnp.exp(scores - m)                                     # (S, S)
        vrow = xv_ref[h:h + 1, :]                                   # (1, S)
        num = jnp.sum(e * vrow, axis=-1, keepdims=True)             # (S, 1)
        den = jnp.sum(e, axis=-1, keepdims=True)                    # (S, 1)
        cols.append(num / den)                                      # (S, 1)

    # GumbelSigmoid deterministic (eval) path == plain sigmoid of the logits.
    # TODO(synk): stochastic gumbel-noise / hard-threshold training branch of
    # GumbelSigmoid and nn.Dropout omitted; eval-mode forward only.
    sel = jax.nn.sigmoid(jnp.concatenate(cols, axis=-1))            # (S, n_heads)
    o_ref[...] = jnp.transpose(sel)                                 # (n_heads, S)


@functools.partial(jax.jit, static_argnums=3)
def l2mhsa_pallas(x, wq, wv, n_heads):
    """x: (B, S, H) f32, wq: (H, H) f32, wv: (H, 1) f32 -> (B, n_heads, S, 1)."""
    B, S, H = x.shape
    assert H % n_heads == 0
    d_head = H // n_heads

    # Collapse the value path:  v_h = Wh_h @ (Wh_h^T @ Wv)   per head, shape (H,).
    wh = jnp.transpose(wq.reshape(H, n_heads, d_head), (1, 0, 2))   # (nh, H, dh)
    whv = jnp.einsum("nkd,k->nd", wh, wv[:, 0])                     # (nh, dh)
    v = jnp.einsum("nkd,nd->nk", wh, whv)                           # (nh, H)
    xv = jnp.einsum("bsk,nk->bns", x, v)                            # (B, nh, S)

    kernel = functools.partial(_l2mhsa_kernel, n_heads=n_heads, d_head=d_head)
    out = pl.pallas_call(
        kernel,
        out_shape=jax.ShapeDtypeStruct((B, n_heads, S), jnp.float32),
        grid=(B,),
        in_specs=[
            pl.BlockSpec((None, S, H), lambda b: (b, 0, 0)),
            pl.BlockSpec((H, H), lambda b: (0, 0)),
            pl.BlockSpec((None, n_heads, S), lambda b: (b, 0, 0)),
        ],
        out_specs=pl.BlockSpec((None, n_heads, S), lambda b: (b, 0, 0)),
        compiler_params=pltpu.CompilerParams(
            dimension_semantics=("parallel",)),
    )(x, wq, xv)
    # TODO(synk): for large S add a query-tile grid axis (flash-style online /
    # two-pass softmax) so the (S, S) score tile stays within VMEM (64 MiB v7x).
    return out[..., None]                                           # (B, nh, S, 1)


def l2mhsa_reference(x, wq, wv, n_heads):
    """Pure-JAX port of the PyTorch forward (mask=None, no dropout, eval)."""
    B, S, H = x.shape
    d_head = H // n_heads
    q = (x @ wq).reshape(B, S, n_heads, d_head).transpose(0, 2, 1, 3)  # (B,n,S,d)
    nrm = jnp.sqrt(jnp.sum(q * q, axis=-1, keepdims=True))             # (B,n,S,1)
    qq = jnp.einsum("bnsd,bntd->bnst", q, q)
    scores = -(nrm - 2.0 * qq + jnp.swapaxes(nrm, -2, -1)) / sqrt(d_head)
    p = jax.nn.softmax(scores, axis=-1)                                # (B,n,S,S)
    wh = jnp.transpose(wq.reshape(H, n_heads, d_head), (1, 0, 2))      # (n,H,d)
    ah = jnp.einsum("nid,njd->nij", wh, wh)                            # (n,H,H)
    px = jnp.einsum("bnst,btk->bnsk", p, x)                            # (B,n,S,H)
    attn = jnp.einsum("bnsk,nkj->bnsj", px, ah)                        # (B,n,S,H)
    applied = attn @ wv                                                # (B,n,S,1)
    return jax.nn.sigmoid(applied)


if __name__ == "__main__":
    B, S = 2, 8
    n_heads, d_hidden = 4, 32

    key = jax.random.PRNGKey(0)
    kx, kq, kv = jax.random.split(key, 3)

    # Deterministic "kaiming_normal_" style init (fan_in mode, gain=sqrt(2)).
    x = jax.random.normal(kx, (B, S, d_hidden), dtype=jnp.float32)
    wq = jax.random.normal(kq, (d_hidden, d_hidden), dtype=jnp.float32) * sqrt(2.0 / d_hidden)
    wv = jax.random.normal(kv, (d_hidden, 1), dtype=jnp.float32) * sqrt(2.0 / 1.0)

    out = jax.block_until_ready(l2mhsa_pallas(x, wq, wv, n_heads))
    ref = l2mhsa_reference(x, wq, wv, n_heads)

    assert out.shape == (B, n_heads, S, 1), out.shape
    max_err = jnp.max(jnp.abs(out - ref))
    # Tolerance relaxed slightly vs 1e-5: the collapsed value path reorders
    # f32 accumulations relative to the reference chain.
    assert jnp.allclose(out, ref, atol=1e-4, rtol=1e-4), f"max abs err {max_err}"

    print("KERNEL_OK")
</pallas_src>

<mosaic_0001>
module attributes {stable_mosaic.version = 11 : i64} {
  func.func @_l2mhsa_kernel(%arg0: i32, %arg1: memref<1x8x32xf32, #tpu.memory_space<vmem>>, %arg2: memref<32x32xf32, #tpu.memory_space<vmem>>, %arg3: memref<1x4x8xf32, #tpu.memory_space<vmem>>, %arg4: memref<1x4x8xf32, #tpu.memory_space<vmem>>) attributes {dimension_semantics = [#tpu.dimension_semantics<parallel>], iteration_bounds = array<i64: 2>, scalar_prefetch = 0 : i64, scratch_operands = 0 : i64, tpu.core_type = #tpu.core_type<tc>, window_params = [{transform_indices = @transform_0, window_bounds = array<i64: 1, 8, 32>}, {pipeline_mode = #tpu.pipeline_mode<synchronous>, transform_indices = @transform_1, window_bounds = array<i64: 32, 32>}, {transform_indices = @transform_2, window_bounds = array<i64: 1, 4, 8>}, {transform_indices = @transform_3, window_bounds = array<i64: 1, 4, 8>}]} {
    %c0 = arith.constant 0 : index
    %c0_0 = arith.constant 0 : index
    %c0_1 = arith.constant 0 : index
    %0 = vector.load %arg1[%c0, %c0_0, %c0_1] : memref<1x8x32xf32, #tpu.memory_space<vmem>>, vector<1x8x32xf32>
    %1 = vector.shape_cast %0 : vector<1x8x32xf32> to vector<8x32xf32>
    %c0_2 = arith.constant 0 : index
    %c0_3 = arith.constant 0 : index
    %2 = vector.load %arg2[%c0_2, %c0_3] : memref<32x32xf32, #tpu.memory_space<vmem>>, vector<32x32xf32>
    %cst = arith.constant dense<0.000000e+00> : vector<8x32xf32>
    %3 = tpu.matmul %1, %2, %cst {dimension_numbers = #tpu.dot_dimension_numbers<[1], [0], [0], [1], [0, 0, 1, 1], [], []>} : vector<8x32xf32>, vector<32x32xf32>, vector<8x32xf32> -> vector<8x32xf32>
    %4 = vector.extract_strided_slice %3 {offsets = [0, 0], sizes = [8, 8], strides = [1, 1]} : vector<8x32xf32> to vector<8x8xf32>
    %cst_4 = arith.constant dense<0.000000e+00> : vector<8x8xf32>
    %5 = tpu.matmul %4, %4, %cst_4 {dimension_numbers = #tpu.dot_dimension_numbers<[1], [1], [0], [0], [0, 0, 1, 0], [], []>} : vector<8x8xf32>, vector<8x8xf32>, vector<8x8xf32> -> vector<8x8xf32>
    %6 = arith.mulf %4, %4 : vector<8x8xf32>
    %cst_5 = arith.constant dense<0.000000e+00> : vector<8xf32>
    %7 = vector.multi_reduction <add>, %6, %cst_5 [1] : vector<8x8xf32> to vector<8xf32>
    %8 = vector.shape_cast %7 : vector<8xf32> to vector<8x1xf32>
    %9 = math.sqrt %8 : vector<8x1xf32>
    %10 = tpu.transpose %9, [1, 0] : vector<8x1xf32> -> vector<1x8xf32>
    %cst_6 = arith.constant 2.000000e+00 : f32
    %11 = vector.broadcast %cst_6 : f32 to vector<8x8xf32>
    %12 = arith.mulf %11, %5 : vector<8x8xf32>
    %13 = vector.broadcast %9 : vector<8x1xf32> to vector<8x8xf32>
    %14 = arith.subf %12, %13 : vector<8x8xf32>
    %15 = vector.broadcast %10 : vector<1x8xf32> to vector<8x8xf32>
    %16 = arith.subf %14, %15 : vector<8x8xf32>
    %cst_7 = arith.constant 0.353553385 : f32
    %17 = vector.broadcast %cst_7 : f32 to vector<8x8xf32>
    %18 = arith.mulf %16, %17 : vector<8x8xf32>
    %cst_8 = arith.constant dense<0xFF800000> : vector<8xf32>
    %19 = vector.multi_reduction <maximumf>, %18, %cst_8 [1] : vector<8x8xf32> to vector<8xf32>
    %20 = vector.shape_cast %19 : vector<8xf32> to vector<8x1xf32>
    %21 = vector.broadcast %20 : vector<8x1xf32> to vector<8x8xf32>
    %22 = arith.subf %18, %21 : vector<8x8xf32>
    %23 = math.exp %22 : vector<8x8xf32>
    %c0_9 = arith.constant 0 : index
    %c0_10 = arith.constant 0 : index
    %c0_11 = arith.constant 0 : index
    %24 = vector.load %arg3[%c0_9, %c0_10, %c0_11] : memref<1x4x8xf32, #tpu.memory_space<vmem>>, vector<1x1x8xf32>
    %25 = vector.shape_cast %24 : vector<1x1x8xf32> to vector<1x8xf32>
    %26 = vector.broadcast %25 : vector<1x8xf32> to vector<8x8xf32>
    %27 = arith.mulf %23, %26 : vector<8x8xf32>
    %cst_12 = arith.constant dense<0.000000e+00> : vector<8xf32>
    %28 = vector.multi_reduction <add>, %27, %cst_12 [1] : vector<8x8xf32> to vector<8xf32>
    %29 = vector.shape_cast %28 : vector<8xf32> to vector<8x1xf32>
    %cst_13 = arith.constant dense<0.000000e+00> : vector<8xf32>
    %30 = vector.multi_reduction <add>, %23, %cst_13 [1] : vector<8x8xf32> to vector<8xf32>
    %31 = vector.shape_cast %30 : vector<8xf32> to vector<8x1xf32>
    %32 = arith.divf %29, %31 : vector<8x1xf32>
    %33 = vector.extract_strided_slice %3 {offsets = [0, 8], sizes = [8, 8], strides = [1, 1]} : vector<8x32xf32> to vector<8x8xf32>
    %cst_14 = arith.constant dense<0.000000e+00> : vector<8x8xf32>
    %34 = tpu.matmul %33, %33, %cst_14 {dimension_numbers = #tpu.dot_dimension_numbers<[1], [1], [0], [0], [0, 0, 1, 0], [], []>} : vector<8x8xf32>, vector<8x8xf32>, vector<8x8xf32> -> vector<8x8xf32>
    %35 = arith.mulf %33, %33 : vector<8x8xf32>
    %cst_15 = arith.constant dense<0.000000e+00> : vector<8xf32>
    %36 = vector.multi_reduction <add>, %35, %cst_15 [1] : vector<8x8xf32> to vector<8xf32>
    %37 = vector.shape_cast %36 : vector<8xf32> to vector<8x1xf32>
    %38 = math.sqrt %37 : vector<8x1xf32>
    %39 = tpu.transpose %38, [1, 0] : vector<8x1xf32> -> vector<1x8xf32>
    %cst_16 = arith.constant 2.000000e+00 : f32
    %40 = vector.broadcast %cst_16 : f32 to vector<8x8xf32>
    %41 = arith.mulf %40, %34 : vector<8x8xf32>
    %42 = vector.broadcast %38 : vector<8x1xf32> to vector<8x8xf32>
    %43 = arith.subf %41, %42 : vector<8x8xf32>
    %44 = vector.broadcast %39 : vector<1x8xf32> to vector<8x8xf32>
    %45 = arith.subf %43, %44 : vector<8x8xf32>
    %cst_17 = arith.constant 0.353553385 : f32
    %46 = vector.broadcast %cst_17 : f32 to vector<8x8xf32>
    %47 = arith.mulf %45, %46 : vector<8x8xf32>
    %cst_18 = arith.constant dense<0xFF800000> : vector<8xf32>
    %48 = vector.multi_reduction <maximumf>, %47, %cst_18 [1] : vector<8x8xf32> to vector<8xf32>
    %49 = vector.shape_cast %48 : vector<8xf32> to vector<8x1xf32>
    %50 = vector.broadcast %49 : vector<8x1xf32> to vector<8x8xf32>
    %51 = arith.subf %47, %50 : vector<8x8xf32>
    %52 = math.exp %51 : vector<8x8xf32>
    %c0_19 = arith.constant 0 : index
    %c1 = arith.constant 1 : index
    %c0_20 = arith.constant 0 : index
    %53 = vector.load %arg3[%c0_19, %c1, %c0_20] : memref<1x4x8xf32, #tpu.memory_space<vmem>>, vector<1x1x8xf32>
    %54 = vector.shape_cast %53 : vector<1x1x8xf32> to vector<1x8xf32>
    %55 = vector.broadcast %54 : vector<1x8xf32> to vector<8x8xf32>
    %56 = arith.mulf %52, %55 : vector<8x8xf32>
    %cst_21 = arith.constant dense<0.000000e+00> : vector<8xf32>
    %57 = vector.multi_reduction <add>, %56, %cst_21 [1] : vector<8x8xf32> to vector<8xf32>
    %58 = vector.shape_cast %57 : vector<8xf32> to vector<8x1xf32>
    %cst_22 = arith.constant dense<0.000000e+00> : vector<8xf32>
    %59 = vector.multi_reduction <add>, %52, %cst_22 [1] : vector<8x8xf32> to vector<8xf32>
    %60 = vector.shape_cast %59 : vector<8xf32> to vector<8x1xf32>
    %61 = arith.divf %58, %60 : vector<8x1xf32>
    %62 = vector.extract_strided_slice %3 {offsets = [0, 16], sizes = [8, 8], strides = [1, 1]} : vector<8x32xf32> to vector<8x8xf32>
    %cst_23 = arith.constant dense<0.000000e+00> : vector<8x8xf32>
    %63 = tpu.matmul %62, %62, %cst_23 {dimension_numbers = #tpu.dot_dimension_numbers<[1], [1], [0], [0], [0, 0, 1, 0], [], []>} : vector<8x8xf32>, vector<8x8xf32>, vector<8x8xf32> -> vector<8x8xf32>
    %64 = arith.mulf %62, %62 : vector<8x8xf32>
    %cst_24 = arith.constant dense<0.000000e+00> : vector<8xf32>
    %65 = vector.multi_reduction <add>, %64, %cst_24 [1] : vector<8x8xf32> to vector<8xf32>
    %66 = vector.shape_cast %65 : vector<8xf32> to vector<8x1xf32>
    %67 = math.sqrt %66 : vector<8x1xf32>
    %68 = tpu.transpose %67, [1, 0] : vector<8x1xf32> -> vector<1x8xf32>
    %cst_25 = arith.constant 2.000000e+00 : f32
    %69 = vector.broadcast %cst_25 : f32 to vector<8x8xf32>
    %70 = arith.mulf %69, %63 : vector<8x8xf32>
    %71 = vector.broadcast %67 : vector<8x1xf32> to vector<8x8xf32>
    %72 = arith.subf %70, %71 : vector<8x8xf32>
    %73 = vector.broadcast %68 : vector<1x8xf32> to vector<8x8xf32>
    %74 = arith.subf %72, %73 : vector<8x8xf32>
    %cst_26 = arith.constant 0.353553385 : f32
    %75 = vector.broadcast %cst_26 : f32 to vector<8x8xf32>
    %76 = arith.mulf %74, %75 : vector<8x8xf32>
    %cst_27 = arith.constant dense<0xFF800000> : vector<8xf32>
    %77 = vector.multi_reduction <maximumf>, %76, %cst_27 [1] : vector<8x8xf32> to vector<8xf32>
    %78 = vector.shape_cast %77 : vector<8xf32> to vector<8x1xf32>
    %79 = vector.broadcast %78 : vector<8x1xf32> to vector<8x8xf32>
    %80 = arith.subf %76, %79 : vector<8x8xf32>
    %81 = math.exp %80 : vector<8x8xf32>
    %c0_28 = arith.constant 0 : index
    %c2 = arith.constant 2 : index
    %c0_29 = arith.constant 0 : index
    %82 = vector.load %arg3[%c0_28, %c2, %c0_29] : memref<1x4x8xf32, #tpu.memory_space<vmem>>, vector<1x1x8xf32>
    %83 = vector.shape_cast %82 : vector<1x1x8xf32> to vector<1x8xf32>
    %84 = vector.broadcast %83 : vector<1x8xf32> to vector<8x8xf32>
    %85 = arith.mulf %81, %84 : vector<8x8xf32>
    %cst_30 = arith.constant dense<0.000000e+00> : vector<8xf32>
    %86 = vector.multi_reduction <add>, %85, %cst_30 [1] : vector<8x8xf32> to vector<8xf32>
    %87 = vector.shape_cast %86 : vector<8xf32> to vector<8x1xf32>
    %cst_31 = arith.constant dense<0.000000e+00> : vector<8xf32>
    %88 = vector.multi_reduction <add>, %81, %cst_31 [1] : vector<8x8xf32> to vector<8xf32>
    %89 = vector.shape_cast %88 : vector<8xf32> to vector<8x1xf32>
    %90 = arith.divf %87, %89 : vector<8x1xf32>
    %91 = vector.extract_strided_slice %3 {offsets = [0, 24], sizes = [8, 8], strides = [1, 1]} : vector<8x32xf32> to vector<8x8xf32>
    %cst_32 = arith.constant dense<0.000000e+00> : vector<8x8xf32>
    %92 = tpu.matmul %91, %91, %cst_32 {dimension_numbers = #tpu.dot_dimension_numbers<[1], [1], [0], [0], [0, 0, 1, 0], [], []>} : vector<8x8xf32>, vector<8x8xf32>, vector<8x8xf32> -> vector<8x8xf32>
    %93 = arith.mulf %91, %91 : vector<8x8xf32>
    %cst_33 = arith.constant dense<0.000000e+00> : vector<8xf32>
    %94 = vector.multi_reduction <add>, %93, %cst_33 [1] : vector<8x8xf32> to vector<8xf32>
    %95 = vector.shape_cast %94 : vector<8xf32> to vector<8x1xf32>
    %96 = math.sqrt %95 : vector<8x1xf32>
    %97 = tpu.transpose %96, [1, 0] : vector<8x1xf32> -> vector<1x8xf32>
    %cst_34 = arith.constant 2.000000e+00 : f32
    %98 = vector.broadcast %cst_34 : f32 to vector<8x8xf32>
    %99 = arith.mulf %98, %92 : vector<8x8xf32>
    %100 = vector.broadcast %96 : vector<8x1xf32> to vector<8x8xf32>
    %101 = arith.subf %99, %100 : vector<8x8xf32>
    %102 = vector.broadcast %97 : vector<1x8xf32> to vector<8x8xf32>
    %103 = arith.subf %101, %102 : vector<8x8xf32>
    %cst_35 = arith.constant 0.353553385 : f32
    %104 = vector.broadcast %cst_35 : f32 to vector<8x8xf32>
    %105 = arith.mulf %103, %104 : vector<8x8xf32>
    %cst_36 = arith.constant dense<0xFF800000> : vector<8xf32>
    %106 = vector.multi_reduction <maximumf>, %105, %cst_36 [1] : vector<8x8xf32> to vector<8xf32>
    %107 = vector.shape_cast %106 : vector<8xf32> to vector<8x1xf32>
    %108 = vector.broadcast %107 : vector<8x1xf32> to vector<8x8xf32>
    %109 = arith.subf %105, %108 : vector<8x8xf32>
    %110 = math.exp %109 : vector<8x8xf32>
    %c0_37 = arith.constant 0 : index
    %c3 = arith.constant 3 : index
    %c0_38 = arith.constant 0 : index
    %111 = vector.load %arg3[%c0_37, %c3, %c0_38] : memref<1x4x8xf32, #tpu.memory_space<vmem>>, vector<1x1x8xf32>
    %112 = vector.shape_cast %111 : vector<1x1x8xf32> to vector<1x8xf32>
    %113 = vector.broadcast %112 : vector<1x8xf32> to vector<8x8xf32>
    %114 = arith.mulf %110, %113 : vector<8x8xf32>
    %cst_39 = arith.constant dense<0.000000e+00> : vector<8xf32>
    %115 = vector.multi_reduction <add>, %114, %cst_39 [1] : vector<8x8xf32> to vector<8xf32>
    %116 = vector.shape_cast %115 : vector<8xf32> to vector<8x1xf32>
    %cst_40 = arith.constant dense<0.000000e+00> : vector<8xf32>
    %117 = vector.multi_reduction <add>, %110, %cst_40 [1] : vector<8x8xf32> to vector<8xf32>
    %118 = vector.shape_cast %117 : vector<8xf32> to vector<8x1xf32>
    %119 = arith.divf %116, %118 : vector<8x1xf32>
    %120 = tpu.concatenate %32, %61, %90, %119 in 1 : vector<8x1xf32>, vector<8x1xf32>, vector<8x1xf32>, vector<8x1xf32> -> vector<8x4xf32>
    %121 = arith.negf %120 : vector<8x4xf32>
    %122 = math.exp %121 : vector<8x4xf32>
    %cst_41 = arith.constant 1.000000e+00 : f32
    %123 = vector.broadcast %cst_41 : f32 to vector<8x4xf32>
    %124 = arith.addf %123, %122 : vector<8x4xf32>
    %125 = arith.divf %123, %124 : vector<8x4xf32>
    %126 = tpu.transpose %125, [1, 0] : vector<8x4xf32> -> vector<4x8xf32>
    %c0_42 = arith.constant 0 : index
    %c0_43 = arith.constant 0 : index
    %c0_44 = arith.constant 0 : index
    %127 = vector.load %arg4[%c0_42, %c0_43, %c0_44] : memref<1x4x8xf32, #tpu.memory_space<vmem>>, vector<1x4x8xf32>
    %128 = vector.shape_cast %127 : vector<1x4x8xf32> to vector<4x8xf32>
    %129 = vector.shape_cast %126 : vector<4x8xf32> to vector<1x4x8xf32>
    tpu.vector_store %arg4[%c0_42, %c0_43, %c0_44], %129 {strides = array<i32>} : memref<1x4x8xf32, #tpu.memory_space<vmem>>, vector<1x4x8xf32>,
    return
  }
  func.func @transform_0(%arg0: i32) -> (i32, i32, i32) {
    %c0_i32 = arith.constant 0 : i32
    %c0_i32_0 = arith.constant 0 : i32
    %c0_i32_1 = arith.constant 0 : i32
    return %arg0, %c0_i32, %c0_i32_0 : i32, i32, i32
  }
  func.func @transform_1(%arg0: i32) -> (i32, i32) {
    %c0_i32 = arith.constant 0 : i32
    %c0_i32_0 = arith.constant 0 : i32
    %c0_i32_1 = arith.constant 0 : i32
    return %c0_i32, %c0_i32_0 : i32, i32
  }
  func.func @transform_2(%arg0: i32) -> (i32, i32, i32) {
    %c0_i32 = arith.constant 0 : i32
    %c0_i32_0 = arith.constant 0 : i32
    %c0_i32_1 = arith.constant 0 : i32
    return %arg0, %c0_i32, %c0_i32_0 : i32, i32, i32
  }
  func.func @transform_3(%arg0: i32) -> (i32, i32, i32) {
    %c0_i32 = arith.constant 0 : i32
    %c0_i32_0 = arith.constant 0 : i32
    %c0_i32_1 = arith.constant 0 : i32
    return %arg0, %c0_i32, %c0_i32_0 : i32, i32, i32
  }
}

</mosaic_0001>

<llo_original>
// kernel: l2mhsa_pallas.1
$region0: #{l2mhsa_pallas.1}
  #allocation0 [shape = 'u32[]', space=smem, size = 0x4, offset = 0x4, fixed_abs, tag = 'smem constant byte address 0x4 - core index']
  #allocation1 [shape = 'u32[144,128]{1,0:T(1,128)}', space=vmem, size = 0x12000, scoped, tag = 'internal scratch']
  %s0 = inlined_call_operand.vmem [shape: f32[2,8,32], index: 0, kind: input, shape index: {}]
  %s1 = inlined_call_operand.vmem [shape: f32[32,32], index: 1, kind: input, shape index: {}]
  %s2 = inlined_call_operand.vmem [shape: f32[2,4,8], index: 2, kind: input, shape index: {}]
  %s3 = inlined_call_operand.hbm [shape: f32[2,4,8], index: 3, kind: output, shape index: {}]
  %s4 = sld [smem:[#allocation0]]
  $region45: #{l2mhsa_pallas.1} parent=0
    _
  %s6 = ssub.s32 1, %s4
  %s7 = scalar_select 0, %s6, %s4
  $region1: #{l2mhsa_pallas.1} parent=0
    #allocation2 [shape = 'u8[4096]{0}', space=vmem, size = 0x1000, scoped, tag = 'output window, operand 0']
    #allocation3 [shape = 's32[2]{0}', space=sflag, size = 0x8, scoped, tag = 'scoped memory for l2mhsa_pallas.1']
    %8 = vsyncpa [#allocation3], 0
    %s9 = scalar_lea.sflag [#allocation3], 1
    %10 = vsyncpa %s9, 0
    loop: start=0, step=1, limit=4
    $region2: #{l2mhsa_pallas.1} parent=1 // loop_pre_header
      _
    $region3: #{l2mhsa_pallas.1} parent=1 // loop_header
      %s12 = sphi 0, %s16
      %p13 = scmp.ge.s32.totalorder %s12, 4
      %s22 = sphi 0, %s24
      %s25 = sphi 0, %s22
      %s26 = sphi 0, %s25
      %s42 = sphi 0, %s26
      %s46 = sphi 0, %s46
      %s48 = sphi 0, %s46
      %s49 = sphi 0, %s48
      %s63 = sphi 0, %s49
      %s69 = sphi 0, %s71
      %s72 = sphi 0, %s69
      %s73 = sphi 0, %s72
      %s89 = sphi 0, %s73
      %s95 = sphi 0, %s97
      %s98 = sphi 0, %s95
      %s99 = sphi 0, %s98
      %s115 = sphi 0, %s99
    $region4: #{l2mhsa_pallas.1} parent=1 // loop_header_branch
      %15 = sbr.rel (%p13) target = $region8
    $region5: #{l2mhsa_pallas.1} parent=1 // loop_body
      %s17 = ssub.s32 %s12, 1
      %s18 = ssub.s32 %s12, 2
      %s19 = sadd.s32 %s12, 1
      %s20 = ssub.s32 %s12, %s19
      %p21 = scmp.eq.s32.totalorder %s20, 0
      %s23 = sadd.s32 %s22, 1
      %s24 = scalar_select %p21, %s22, %s23
      %p27 = pneg %p21
      %p28 = scmp.eq.s32.totalorder %s12, 1
      %p29 = por %p27, %p28
      %p30 = scmp.ne.s32.totalorder %s22, %s25
      %p31 = scmp.eq.s32.totalorder %s12, 0
      %p32 = por %p30, %p31
      %p33 = scmp.ne.s32.totalorder %s22, %s25
      %p34 = scmp.eq.s32.totalorder %s17, 1
      %p35 = por %p33, %p34
      %p36 = scmp.ne.s32.totalorder %s25, %s26
      %p37 = scmp.eq.s32.totalorder %s17, 0
      %p38 = por %p36, %p37
      %p39 = scmp.ne.s32.totalorder %s25, %s26
      %p40 = scmp.eq.s32.totalorder %s18, 1
      %p41 = por %p39, %p40
      %p43 = scmp.ne.s32.totalorder %s26, %s42
      %p44 = scmp.eq.s32.totalorder %s18, 0
      %p45 = por %p43, %p44
      %s47 = sadd.s32 %s46, 1
      %p50 = scmp.eq.s32.totalorder %s12, 1
      %p51 = scmp.ne.s32.totalorder %s46, %s48
      %p52 = scmp.eq.s32.totalorder %s12, 0
      %p53 = por %p51, %p52
      %p54 = scmp.ne.s32.totalorder %s46, %s48
      %p55 = scmp.eq.s32.totalorder %s17, 1
      %p56 = por %p54, %p55
      %p57 = scmp.ne.s32.totalorder %s48, %s49
      %p58 = scmp.eq.s32.totalorder %s17, 0
      %p59 = por %p57, %p58
      %p60 = scmp.ne.s32.totalorder %s48, %s49
      %p61 = scmp.eq.s32.totalorder %s18, 1
      %p62 = por %p60, %p61
      %p64 = scmp.ne.s32.totalorder %s49, %s63
      %p65 = scmp.eq.s32.totalorder %s18, 0
      %p66 = por %p64, %p65
      %s67 = ssub.s32 %s12, %s19
      %p68 = scmp.eq.s32.totalorder %s67, 0
      %s70 = sadd.s32 %s69, 1
      %s71 = scalar_select %p68, %s69, %s70
      %p74 = pneg %p68
      %p75 = scmp.eq.s32.totalorder %s12, 1
      %p76 = por %p74, %p75
      %p77 = scmp.ne.s32.totalorder %s69, %s72
      %p78 = scmp.eq.s32.totalorder %s12, 0
      %p79 = por %p77, %p78
      %p80 = scmp.ne.s32.totalorder %s69, %s72
      %p81 = scmp.eq.s32.totalorder %s17, 1
      %p82 = por %p80, %p81
      %p83 = scmp.ne.s32.totalorder %s72, %s73
      %p84 = scmp.eq.s32.totalorder %s17, 0
      %p85 = por %p83, %p84
      %p86 = scmp.ne.s32.totalorder %s72, %s73
      %p87 = scmp.eq.s32.totalorder %s18, 1
      %p88 = por %p86, %p87
      %p90 = scmp.ne.s32.totalorder %s73, %s89
      %p91 = scmp.eq.s32.totalorder %s18, 0
      %p92 = por %p90, %p91
      %s93 = ssub.s32 %s12, %s19
      %p94 = scmp.eq.s32.totalorder %s93, 0
      %s96 = sadd.s32 %s95, 1
      %s97 = scalar_select %p94, %s95, %s96
      %p100 = pneg %p94
      %p101 = scmp.eq.s32.totalorder %s12, 1
      %p102 = por %p100, %p101
      %p103 = scmp.ne.s32.totalorder %s95, %s98
      %p104 = scmp.eq.s32.totalorder %s12, 0
      %p105 = por %p103, %p104
      %p106 = scmp.ne.s32.totalorder %s95, %s98
      %p107 = scmp.eq.s32.totalorder %s17, 1
      %p108 = por %p106, %p107
      %p109 = scmp.ne.s32.totalorder %s98, %s99
      %p110 = scmp.eq.s32.totalorder %s17, 0
      %p111 = por %p109, %p110
      %p112 = scmp.ne.s32.totalorder %s98, %s99
      %p113 = scmp.eq.s32.totalorder %s18, 1
      %p114 = por %p112, %p113
      %p116 = scmp.ne.s32.totalorder %s99, %s115
      %p117 = scmp.eq.s32.totalorder %s18, 0
      %p118 = por %p116, %p117
      %p119 = scmp.le.s32.totalorder 1, %s12
      %p120 = scmp.lt.s32.totalorder %s12, 3
      %p121 = pnand %p119, %p120
      %p122 = pneg %p121
      // Predicated region
      $region9: #{l2mhsa_pallas.1} parent=5 // pred_check
        _
      $region10: #{l2mhsa_pallas.1} parent=5 // pred_check_branch
        %124 = sbr.rel (%p121) target = $region12
      $region11: #{l2mhsa_pallas.1} parent=5 // pred_region
        %s125 = ssub.s32 %s12, 1
        // Predicated region
        $region13: #{l2mhsa_pallas.1} parent=11 // pred_check
          %p126 = pneg %p59
        $region14: #{l2mhsa_pallas.1} parent=11 // pred_check_branch
          %128 = sbr.rel (%p126) target = $region16
        $region15: #{l2mhsa_pallas.1} parent=11 // pred_region
          _
        $region16: #{l2mhsa_pallas.1} parent=11 // pred_fallthru
          _
      $region12: #{l2mhsa_pallas.1} parent=5 // pred_fallthru
        _
      %p129 = scmp.lt.s32.totalorder %s12, 2
      // Predicated region
      $region17: #{l2mhsa_pallas.1} parent=5 // pred_check
        %p130 = pneg %p129
      $region18: #{l2mhsa_pallas.1} parent=5 // pred_check_branch
        %132 = sbr.rel (%p130) target = $region20
      $region19: #{l2mhsa_pallas.1} parent=5 // pred_region
        // Predicated region
        $region21: #{l2mhsa_pallas.1} parent=19 // pred_check
          %p133 = pneg %p32
        $region22: #{l2mhsa_pallas.1} parent=19 // pred_check_branch
          %135 = sbr.rel (%p133) target = $region24
        $region23: #{l2mhsa_pallas.1} parent=19 // pred_region
          %p136 = scmp.lt.s32.totalorder %s12, 1
          %s137 = scalar_select %p136, %s12, 1
          %s138 = smul.addr %s137, 8
          %s139 = scalar_lea.vmem %s0, %s138
        $region24: #{l2mhsa_pallas.1} parent=19 // pred_fallthru
          _
        // Predicated region
        $region25: #{l2mhsa_pallas.1} parent=19 // pred_check
          %p140 = pneg %p79
        $region26: #{l2mhsa_pallas.1} parent=19 // pred_check_branch
          %142 = sbr.rel (%p140) target = $region28
        $region27: #{l2mhsa_pallas.1} parent=19 // pred_region
          %p143 = scmp.lt.s32.totalorder %s12, 1
          %s144 = scalar_select %p143, %s12, 1
          %s145 = smul.addr %s144, 4
          %s146 = scalar_lea.vmem %s2, %s145
        $region28: #{l2mhsa_pallas.1} parent=19 // pred_fallthru
          _
      $region20: #{l2mhsa_pallas.1} parent=5 // pred_fallthru
        _
      %p147 = scmp.le.s32.totalorder 1, %s12
      %p148 = scmp.lt.s32.totalorder %s12, 3
      %p149 = pnand %p147, %p148
      %p150 = pneg %p149
      // Predicated region
      $region29: #{l2mhsa_pallas.1} parent=5 // pred_check
        _
      $region30: #{l2mhsa_pallas.1} parent=5 // pred_check_branch
        %152 = sbr.rel (%p149) target = $region32
      $region31: #{l2mhsa_pallas.1} parent=5 // pred_region
        %s153 = ssub.s32 %s12, 1
        %p154 = scmp.lt.s32.totalorder %s17, 1
        %s155 = scalar_select %p154, %s17, 1
        %s156 = smul.addr %s155, 8
        %s157 = scalar_lea.vmem %s0, %s156
        %p158 = pneg %p38
        %p159 = pneg %p35
        %p160 = pneg %p59
        %p161 = pneg %p56
        %p162 = scmp.lt.s32.totalorder %s17, 1
        %s163 = scalar_select %p162, %s17, 1
        %s164 = smul.addr %s163, 4
        %s165 = scalar_lea.vmem %s2, %s164
        %p166 = pneg %p85
        %p167 = pneg %p82
        %p168 = pneg %p111
        %p169 = pneg %p108
        %s170 = sand.u32 %s98, 1
        %s171 = scalar_lea.sflag [#allocation3], %s170
        %s172 = sand.u32 %s98, 1
        %s173 = smul.addr %s172, 4
        %s174 = scalar_lea.vmem [#allocation2], %s173
        %p175 = scmp.lt.s32.totalorder %s17, 1
        %s176 = scalar_select %p175, %s17, 1
        %s177 = smul.addr %s176, 8
        %s178 = scalar_lea.vmem %s0, %s177
        %p179 = scmp.lt.s32.totalorder %s17, 1
        %s180 = scalar_select %p179, %s17, 1
        %s181 = smul.addr %s180, 4
        %s182 = scalar_lea.vmem %s2, %s181
        %v183 = vld [vmem:[%s178] sm:$0xff]
        %v184 = vld [vmem:[%s1] sm:$0xff]
        %v185 = vld [vmem:[%s1 + $0x8] sm:$0xff]
        %v186 = vld [vmem:[%s1 + $0x10] sm:$0xff]
        %v187 = vld [vmem:[%s1 + $0x18] sm:$0xff]
        %vm188 = vcmask 261120
        %v190 = vsel %vm188, %v183, 0
        %192 = vmatprep.subr.mxu0 0.0
        %193 = vmatpush1.msra.mxu0 %v184
        %194 = vmatprep.subr.mxu0 0.0
        %195 = vmatpush1.msra.mxu0 %v185
        %196 = vmatprep.subr.mxu0 0.0
        %197 = vmatpush1.msra.mxu0 %v186
        %198 = vmatprep.subr.mxu0 0.0
        %199 = vmatpush1.msra.mxu0 %v187
        %200 = vmatprep.subr.mxu0 0.0
        %201 = vmatpush1.msra.mxu0 0.0
        %202 = vmatprep.subr.mxu0 0.0
        %203 = vmatpush1.msra.mxu0 0.0
        %204 = vmatprep.subr.mxu0 0.0
        %205 = vmatpush1.msra.mxu0 0.0
        %206 = vmatprep.subr.mxu0 0.0
        %207 = vmatpush1.msra.mxu0 0.0
        %208 = vmatprep.subr.mxu0 0.0
        %209 = vmatpush1.msra.mxu0 0.0
        %210 = vmatprep.subr.mxu0 0.0
        %211 = vmatpush1.msra.mxu0 0.0
        %212 = vmatprep.subr.mxu0 0.0
        %213 = vmatpush1.msra.mxu0 0.0
        %214 = vmatprep.subr.mxu0 0.0
        %215 = vmatpush1.msra.mxu0 0.0
        %216 = vmatprep.subr.mxu0 0.0
        %217 = vmatpush1.msra.mxu0 0.0
        %218 = vmatprep.subr.mxu0 0.0
        %219 = vmatpush1.msra.mxu0 0.0
        %220 = vmatprep.subr.mxu0 0.0
        %221 = vmatpush1.msra.mxu0 0.0
        %222 = vmatprep.subr.mxu0 0.0
        %223 = vmatpush1.msra.mxu0 0.0
        %224 = vmatprep.subr.mxu0 0.0
        %225 = vmatpush1.msra.mxu0 0.0
        %226 = vmatprep.subr.mxu0 0.0
        %227 = vmatpush1.msra.mxu0 0.0
        %228 = vmatprep.subr.mxu0 0.0
        %229 = vmatpush1.msra.mxu0 0.0
        %230 = vmatprep.subr.mxu0 0.0
        %231 = vmatpush1.msra.mxu0 0.0
        %232 = vmatprep.subr.mxu0 0.0
        %233 = vmatpush1.msra.mxu0 0.0
        %234 = vmatprep.subr.mxu0 0.0
        %235 = vmatpush1.msra.mxu0 0.0
        %236 = vmatprep.subr.mxu0 0.0
        %237 = vmatpush1.msra.mxu0 0.0
        %238 = vmatprep.subr.mxu0 0.0
        %239 = vmatpush1.msra.mxu0 0.0
        %240 = vmatprep.subr.mxu0 0.0
        %241 = vmatpush1.msra.mxu0 0.0
        %242 = vmatprep.subr.mxu0 0.0
        %243 = vmatpush1.msra.mxu0 0.0
        %244 = vmatprep.subr.mxu0 0.0
        %245 = vmatpush1.msra.mxu0 0.0
        %246 = vmatprep.subr.mxu0 0.0
        %247 = vmatpush1.msra.mxu0 0.0
        %248 = vmatprep.subr.mxu0 0.0
        %249 = vmatpush1.msra.mxu0 0.0
        %250 = vmatprep.subr.mxu0 0.0
        %251 = vmatpush1.msra.mxu0 0.0
        %252 = vmatprep.subr.mxu0 0.0
        %253 = vmatpush1.msra.mxu0 0.0
        %254 = vmatprep.subr.mxu0 0.0
        %255 = vmatpush1.msra.mxu0 0.0
        %256 = vmatprep.mubr.f32.mxu0 0.0
        %257 = vmatmul.mubr.f32.gmra.mrb[0].mxu0 %v190
        %v258 = vpop.f32.mrb[0].mxu0
        %v259 = vadd.f32 0.0, %v258
        %v260 = vpop.f32.mrb[0].mxu0
        %261 = vdwg.mxu0
        %vm262 = vcmask 64512
        %v264 = vsel %vm262, %v259, 0
        %266 = vmatprep.subr.mxu0 0.0
        %267 = vmatpush1.xpose.msra.mxu0 %v264
        %268 = vmatprep.subr.mxu0 0.0
        %269 = vmatpush1.xpose.msra.mxu0 0.0
        %270 = vmatprep.subr.mxu0 0.0
        %271 = vmatpush1.xpose.msra.mxu0 0.0
        %272 = vmatprep.subr.mxu0 0.0
        %273 = vmatpush1.xpose.msra.mxu0 0.0
        %274 = vmatprep.subr.mxu0 0.0
        %275 = vmatpush1.xpose.msra.mxu0 0.0
        %276 = vmatprep.subr.mxu0 0.0
        %277 = vmatpush1.xpose.msra.mxu0 0.0
        %278 = vmatprep.subr.mxu0 0.0
        %279 = vmatpush1.xpose.msra.mxu0 0.0
        %280 = vmatprep.subr.mxu0 0.0
        %281 = vmatpush1.xpose.msra.mxu0 0.0
        %282 = vmatprep.subr.mxu0 0.0
        %283 = vmatpush1.xpose.msra.mxu0 0.0
        %284 = vmatprep.subr.mxu0 0.0
        %285 = vmatpush1.xpose.msra.mxu0 0.0
        %286 = vmatprep.subr.mxu0 0.0
        %287 = vmatpush1.xpose.msra.mxu0 0.0
        %288 = vmatprep.subr.mxu0 0.0
        %289 = vmatpush1.xpose.msra.mxu0 0.0
        %290 = vmatprep.subr.mxu0 0.0
        %291 = vmatpush1.xpose.msra.mxu0 0.0
        %292 = vmatprep.subr.mxu0 0.0
        %293 = vmatpush1.xpose.msra.mxu0 0.0
        %294 = vmatprep.subr.mxu0 0.0
        %295 = vmatpush1.xpose.msra.mxu0 0.0
        %296 = vmatprep.subr.mxu0 0.0
        %297 = vmatpush1.xpose.msra.mxu0 0.0
        %298 = vmatprep.subr.mxu0 0.0
        %299 = vmatpush1.xpose.msra.mxu0 0.0
        %300 = vmatprep.subr.mxu0 0.0
        %301 = vmatpush1.xpose.msra.mxu0 0.0
        %302 = vmatprep.subr.mxu0 0.0
        %303 = vmatpush1.xpose.msra.mxu0 0.0
        %304 = vmatprep.subr.mxu0 0.0
        %305 = vmatpush1.xpose.msra.mxu0 0.0
        %306 = vmatprep.subr.mxu0 0.0
        %307 = vmatpush1.xpose.msra.mxu0 0.0
        %308 = vmatprep.subr.mxu0 0.0
        %309 = vmatpush1.xpose.msra.mxu0 0.0
        %310 = vmatprep.subr.mxu0 0.0
        %311 = vmatpush1.xpose.msra.mxu0 0.0
        %312 = vmatprep.subr.mxu0 0.0
        %313 = vmatpush1.xpose.msra.mxu0 0.0
        %314 = vmatprep.subr.mxu0 0.0
        %315 = vmatpush1.xpose.msra.mxu0 0.0
        %316 = vmatprep.subr.mxu0 0.0
        %317 = vmatpush1.xpose.msra.mxu0 0.0
        %318 = vmatprep.subr.mxu0 0.0
        %319 = vmatpush1.xpose.msra.mxu0 0.0
        %320 = vmatprep.subr.mxu0 0.0
        %321 = vmatpush1.xpose.msra.mxu0 0.0
        %322 = vmatprep.subr.mxu0 0.0
        %323 = vmatpush1.xpose.msra.mxu0 0.0
        %324 = vmatprep.subr.mxu0 0.0
        %325 = vmatpush1.xpose.msra.mxu0 0.0
        %326 = vmatprep.subr.mxu0 0.0
        %327 = vmatpush1.xpose.msra.mxu0 0.0
        %328 = vmatprep.subr.mxu0 0.0
        %329 = vmatpush1.xpose.msra.mxu0 0.0
        %330 = vmatprep.mubr.f32.mxu0 0.0
        %331 = vmatmul.mubr.f32.gmra.mrb[0].mxu0 %v264
        %v332 = vpop.f32.mrb[0].mxu0
        %v333 = vadd.f32 0.0, %v332
        %v334 = vpop.f32.mrb[0].mxu0
        %335 = vdwg.mxu0
        %v336 = vmul.f32 %v259, %v259
        %v337 = vsel %vm262, %v336, 0.0
        %338 = vadd.xlane.f32.xlu0 %v337
        %v339 = vpop.xlane.xlu0 %338
        %v340 = vrsqrt.pop %v339
        %v341 = vmul.f32 %v339, %v340
        %vm342 = vcmp.eq.f32.partialorder %v339, inf
        %v343 = vsel %vm342, %v339, %v341
        %vm344 = vcmp.eq.f32.partialorder %v339, 0.0
        %v345 = vand.u32 %v339, 2147483648
        %v346 = vsel %vm344, %v345, %v343
        %347 = vxpose.xlu0.b32.start [1/16] %v346, 128
        %348 = vxpose.xlu0.b32.cont [2/16] 0.0, 128
        %349 = vxpose.xlu0.b32.cont [3/16] 0.0, 128
        %350 = vxpose.xlu0.b32.cont [4/16] 0.0, 128
        %351 = vxpose.xlu0.b32.cont [5/16] 0.0, 128
        %352 = vxpose.xlu0.b32.cont [6/16] 0.0, 128
        %353 = vxpose.xlu0.b32.cont [7/16] 0.0, 128
        %354 = vxpose.xlu0.b32.cont [8/16] 0.0, 128
        %355 = vxpose.xlu0.b32.cont [9/16] 0.0, 128
        %356 = vxpose.xlu0.b32.cont [10/16] 0.0, 128
        %357 = vxpose.xlu0.b32.cont [11/16] 0.0, 128
        %358 = vxpose.xlu0.b32.cont [12/16] 0.0, 128
        %359 = vxpose.xlu0.b32.cont [13/16] 0.0, 128
        %360 = vxpose.xlu0.b32.cont [14/16] 0.0, 128
        %361 = vxpose.xlu0.b32.cont [15/16] 0.0, 128
        %362 = vxpose.xlu0.b32.end [16/16] 0.0, 128
        %v363 = vpop.trf.xlu0
        %v364 = vpop.trf.xlu0
        %v365 = vpop.trf.xlu0
        %v366 = vpop.trf.xlu0
        %v367 = vpop.trf.xlu0
        %v368 = vpop.trf.xlu0
        %v369 = vpop.trf.xlu0
        %v370 = vpop.trf.xlu0
        %v371 = vpop.trf.xlu0
        %v372 = vpop.trf.xlu0
        %v373 = vpop.trf.xlu0
        %v374 = vpop.trf.xlu0
        %v375 = vpop.trf.xlu0
        %v376 = vpop.trf.xlu0
        %v377 = vpop.trf.xlu0
        %v378 = vpop.trf.xlu0
        %v379 = vmul.f32 %v333, 2.0
        %v380 = vsub.f32 %v379, %v346
        %v381 = vlaneseq
        %v382 = vshrl.u32 %v381, 7
        %v383 = vsub.s32 0, %v382
        %v384 = vrot.slane %v363, %v383
        %v385 = vsub.f32 %v380, %v384
        %v386 = vmul.f32 %v385, 0.35355338
        %v387 = vsel %vm262, %v386, -inf
        %388 = vmax.xlane.f32.xlu0 %v387
        %v389 = vpop.xlane.xlu0 %388
        %v390 = vsub.f32 %v386, %v389
        %v391 = vmul.f32 %v390, 1.442695
        %v392 = vpow.pop %v391
        %v393 = vld [vmem:[%s182] sm:$0x1]
        %v394 = vlaneseq
        %v395 = vshrl.u32 %v394, 7
        %v396 = vsub.s32 0, %v395
        %v397 = vrot.slane %v393, %v396
        %v398 = vmul.f32 %v392, %v397
        %v399 = vsel %vm262, %v398, 0.0
        %400 = vadd.xlane.f32.xlu0 %v399
        %v401 = vpop.xlane.xlu0 %400
        %v402 = vsel %vm262, %v392, 0.0
        %403 = vadd.xlane.f32.xlu0 %v402
        %v404 = vpop.xlane.xlu0 %403
        %v405 = vrcp.pop %v404
        %v406 = vmul.f32 %v401, %v405
        %407 = vrot.lane.b32.xlu0 %v259, 120
        %v408 = vpop.permute.xlu0 %407
        %v409 = vsel %vm262, %v408, 0
        %411 = vmatprep.subr.mxu0 0.0
        %412 = vmatpush1.xpose.msra.mxu0 %v409
        %413 = vmatprep.subr.mxu0 0.0
        %414 = vmatpush1.xpose.msra.mxu0 0.0
        %415 = vmatprep.subr.mxu0 0.0
        %416 = vmatpush1.xpose.msra.mxu0 0.0
        %417 = vmatprep.subr.mxu0 0.0
        %418 = vmatpush1.xpose.msra.mxu0 0.0
        %419 = vmatprep.subr.mxu0 0.0
        %420 = vmatpush1.xpose.msra.mxu0 0.0
        %421 = vmatprep.subr.mxu0 0.0
        %422 = vmatpush1.xpose.msra.mxu0 0.0
        %423 = vmatprep.subr.mxu0 0.0
        %424 = vmatpush1.xpose.msra.mxu0 0.0
        %425 = vmatprep.subr.mxu0 0.0
        %426 = vmatpush1.xpose.msra.mxu0 0.0
        %427 = vmatprep.subr.mxu0 0.0
        %428 = vmatpush1.xpose.msra.mxu0 0.0
        %429 = vmatprep.subr.mxu0 0.0
        %430 = vmatpush1.xpose.msra.mxu0 0.0
        %431 = vmatprep.subr.mxu0 0.0
        %432 = vmatpush1.xpose.msra.mxu0 0.0
        %433 = vmatprep.subr.mxu0 0.0
        %434 = vmatpush1.xpose.msra.mxu0 0.0
        %435 = vmatprep.subr.mxu0 0.0
        %436 = vmatpush1.xpose.msra.mxu0 0.0
        %437 = vmatprep.subr.mxu0 0.0
        %438 = vmatpush1.xpose.msra.mxu0 0.0
        %439 = vmatprep.subr.mxu0 0.0
        %440 = vmatpush1.xpose.msra.mxu0 0.0
        %441 = vmatprep.subr.mxu0 0.0
        %442 = vmatpush1.xpose.msra.mxu0 0.0
        %443 = vmatprep.subr.mxu0 0.0
        %444 = vmatpush1.xpose.msra.mxu0 0.0
        %445 = vmatprep.subr.mxu0 0.0
        %446 = vmatpush1.xpose.msra.mxu0 0.0
        %447 = vmatprep.subr.mxu0 0.0
        %448 = vmatpush1.xpose.msra.mxu0 0.0
        %449 = vmatprep.subr.mxu0 0.0
        %450 = vmatpush1.xpose.msra.mxu0 0.0
        %451 = vmatprep.subr.mxu0 0.0
        %452 = vmatpush1.xpose.msra.mxu0 0.0
        %453 = vmatprep.subr.mxu0 0.0
        %454 = vmatpush1.xpose.msra.mxu0 0.0
        %455 = vmatprep.subr.mxu0 0.0
        %456 = vmatpush1.xpose.msra.mxu0 0.0
        %457 = vmatprep.subr.mxu0 0.0
        %458 = vmatpush1.xpose.msra.mxu0 0.0
        %459 = vmatprep.subr.mxu0 0.0
        %460 = vmatpush1.xpose.msra.mxu0 0.0
        %461 = vmatprep.subr.mxu0 0.0
        %462 = vmatpush1.xpose.msra.mxu0 0.0
        %463 = vmatprep.subr.mxu0 0.0
        %464 = vmatpush1.xpose.msra.mxu0 0.0
        %465 = vmatprep.subr.mxu0 0.0
        %466 = vmatpush1.xpose.msra.mxu0 0.0
        %467 = vmatprep.subr.mxu0 0.0
        %468 = vmatpush1.xpose.msra.mxu0 0.0
        %469 = vmatprep.subr.mxu0 0.0
        %470 = vmatpush1.xpose.msra.mxu0 0.0
        %471 = vmatprep.subr.mxu0 0.0
        %472 = vmatpush1.xpose.msra.mxu0 0.0
        %473 = vmatprep.subr.mxu0 0.0
        %474 = vmatpush1.xpose.msra.mxu0 0.0
        %475 = vmatprep.mubr.f32.mxu0 0.0
        %476 = vmatmul.mubr.f32.gmra.mrb[0].mxu0 %v409
        %v477 = vpop.f32.mrb[0].mxu0
        %v478 = vadd.f32 0.0, %v477
        %v479 = vpop.f32.mrb[0].mxu0
        %480 = vdwg.mxu0
        %482 = vrot.lane.b32.xlu0 %v336, 120
        %v483 = vpop.permute.xlu0 %482
        %v485 = vsel %vm262, %v483, 0.0
        %486 = vadd.xlane.f32.xlu0 %v485
        %v487 = vpop.xlane.xlu0 %486
        %v488 = vrsqrt.pop %v487
        %v489 = vmul.f32 %v487, %v488
        %vm490 = vcmp.eq.f32.partialorder %v487, inf
        %v491 = vsel %vm490, %v487, %v489
        %vm492 = vcmp.eq.f32.partialorder %v487, 0.0
        %v493 = vand.u32 %v487, 2147483648
        %v494 = vsel %vm492, %v493, %v491
        %495 = vxpose.xlu0.b32.start [1/16] %v494, 128
        %496 = vxpose.xlu0.b32.cont [2/16] 0.0, 128
        %497 = vxpose.xlu0.b32.cont [3/16] 0.0, 128
        %498 = vxpose.xlu0.b32.cont [4/16] 0.0, 128
        %499 = vxpose.xlu0.b32.cont [5/16] 0.0, 128
        %500 = vxpose.xlu0.b32.cont [6/16] 0.0, 128
        %501 = vxpose.xlu0.b32.cont [7/16] 0.0, 128
        %502 = vxpose.xlu0.b32.cont [8/16] 0.0, 128
        %503 = vxpose.xlu0.b32.cont [9/16] 0.0, 128
        %504 = vxpose.xlu0.b32.cont [10/16] 0.0, 128
        %505 = vxpose.xlu0.b32.cont [11/16] 0.0, 128
        %506 = vxpose.xlu0.b32.cont [12/16] 0.0, 128
        %507 = vxpose.xlu0.b32.cont [13/16] 0.0, 128
        %508 = vxpose.xlu0.b32.cont [14/16] 0.0, 128
        %509 = vxpose.xlu0.b32.cont [15/16] 0.0, 128
        %510 = vxpose.xlu0.b32.end [16/16] 0.0, 128
        %v511 = vpop.trf.xlu0
        %v512 = vpop.trf.xlu0
        %v513 = vpop.trf.xlu0
        %v514 = vpop.trf.xlu0
        %v515 = vpop.trf.xlu0
        %v516 = vpop.trf.xlu0
        %v517 = vpop.trf.xlu0
        %v518 = vpop.trf.xlu0
        %v519 = vpop.trf.xlu0
        %v520 = vpop.trf.xlu0
        %v521 = vpop.trf.xlu0
        %v522 = vpop.trf.xlu0
        %v523 = vpop.trf.xlu0
        %v524 = vpop.trf.xlu0
        %v525 = vpop.trf.xlu0
        %v526 = vpop.trf.xlu0
        %v527 = vmul.f32 %v478, 2.0
        %v528 = vsub.f32 %v527, %v494
        %v529 = vlaneseq
        %v530 = vshrl.u32 %v529, 7
        %v531 = vsub.s32 0, %v530
        %v532 = vrot.slane %v511, %v531
        %v533 = vsub.f32 %v528, %v532
        %v534 = vmul.f32 %v533, 0.35355338
        %v535 = vsel %vm262, %v534, -inf
        %536 = vmax.xlane.f32.xlu0 %v535
        %v537 = vpop.xlane.xlu0 %536
        %v538 = vsub.f32 %v534, %v537
        %v539 = vmul.f32 %v538, 1.442695
        %v540 = vpow.pop %v539
        %v541 = vld [vmem:[%s182 + $0x1] sm:$0x1]
        %v542 = vlaneseq
        %v543 = vshrl.u32 %v542, 7
        %v544 = vsub.s32 0, %v543
        %v545 = vrot.slane %v541, %v544
        %v546 = vmul.f32 %v540, %v545
        %v547 = vsel %vm262, %v546, 0.0
        %548 = vadd.xlane.f32.xlu0 %v547
        %v549 = vpop.xlane.xlu0 %548
        %v550 = vsel %vm262, %v540, 0.0
        %551 = vadd.xlane.f32.xlu0 %v550
        %v552 = vpop.xlane.xlu0 %551
        %v553 = vrcp.pop %v552
        %v554 = vmul.f32 %v549, %v553
        %555 = vrot.lane.b32.xlu0 %v259, 112
        %v556 = vpop.permute.xlu0 %555
        %v557 = vsel %vm262, %v556, 0
        %559 = vmatprep.subr.mxu0 0.0
        %560 = vmatpush1.xpose.msra.mxu0 %v557
        %561 = vmatprep.subr.mxu0 0.0
        %562 = vmatpush1.xpose.msra.mxu0 0.0
        %563 = vmatprep.subr.mxu0 0.0
        %564 = vmatpush1.xpose.msra.mxu0 0.0
        %565 = vmatprep.subr.mxu0 0.0
        %566 = vmatpush1.xpose.msra.mxu0 0.0
        %567 = vmatprep.subr.mxu0 0.0
        %568 = vmatpush1.xpose.msra.mxu0 0.0
        %569 = vmatprep.subr.mxu0 0.0
        %570 = vmatpush1.xpose.msra.mxu0 0.0
        %571 = vmatprep.subr.mxu0 0.0
        %572 = vmatpush1.xpose.msra.mxu0 0.0
        %573 = vmatprep.subr.mxu0 0.0
        %574 = vmatpush1.xpose.msra.mxu0 0.0
        %575 = vmatprep.subr.mxu0 0.0
        %576 = vmatpush1.xpose.msra.mxu0 0.0
        %577 = vmatprep.subr.mxu0 0.0
        %578 = vmatpush1.xpose.msra.mxu0 0.0
        %579 = vmatprep.subr.mxu0 0.0
        %580 = vmatpush1.xpose.msra.mxu0 0.0
        %581 = vmatprep.subr.mxu0 0.0
        %582 = vmatpush1.xpose.msra.mxu0 0.0
        %583 = vmatprep.subr.mxu0 0.0
        %584 = vmatpush1.xpose.msra.mxu0 0.0
        %585 = vmatprep.subr.mxu0 0.0
        %586 = vmatpush1.xpose.msra.mxu0 0.0
        %587 = vmatprep.subr.mxu0 0.0
        %588 = vmatpush1.xpose.msra.mxu0 0.0
        %589 = vmatprep.subr.mxu0 0.0
        %590 = vmatpush1.xpose.msra.mxu0 0.0
        %591 = vmatprep.subr.mxu0 0.0
        %592 = vmatpush1.xpose.msra.mxu0 0.0
        %593 = vmatprep.subr.mxu0 0.0
        %594 = vmatpush1.xpose.msra.mxu0 0.0
        %595 = vmatprep.subr.mxu0 0.0
        %596 = vmatpush1.xpose.msra.mxu0 0.0
        %597 = vmatprep.subr.mxu0 0.0
        %598 = vmatpush1.xpose.msra.mxu0 0.0
        %599 = vmatprep.subr.mxu0 0.0
        %600 = vmatpush1.xpose.msra.mxu0 0.0
        %601 = vmatprep.subr.mxu0 0.0
        %602 = vmatpush1.xpose.msra.mxu0 0.0
        %603 = vmatprep.subr.mxu0 0.0
        %604 = vmatpush1.xpose.msra.mxu0 0.0
        %605 = vmatprep.subr.mxu0 0.0
        %606 = vmatpush1.xpose.msra.mxu0 0.0
        %607 = vmatprep.subr.mxu0 0.0
        %608 = vmatpush1.xpose.msra.mxu0 0.0
        %609 = vmatprep.subr.mxu0 0.0
        %610 = vmatpush1.xpose.msra.mxu0 0.0
        %611 = vmatprep.subr.mxu0 0.0
        %612 = vmatpush1.xpose.msra.mxu0 0.0
        %613 = vmatprep.subr.mxu0 0.0
        %614 = vmatpush1.xpose.msra.mxu0 0.0
        %615 = vmatprep.subr.mxu0 0.0
        %616 = vmatpush1.xpose.msra.mxu0 0.0
        %617 = vmatprep.subr.mxu0 0.0
        %618 = vmatpush1.xpose.msra.mxu0 0.0
        %619 = vmatprep.subr.mxu0 0.0
        %620 = vmatpush1.xpose.msra.mxu0 0.0
        %621 = vmatprep.subr.mxu0 0.0
        %622 = vmatpush1.xpose.msra.mxu0 0.0
        %623 = vmatprep.mubr.f32.mxu0 0.0
        %624 = vmatmul.mubr.f32.gmra.mrb[0].mxu0 %v557
        %v625 = vpop.f32.mrb[0].mxu0
        %v626 = vadd.f32 0.0, %v625
        %v627 = vpop.f32.mrb[0].mxu0
        %628 = vdwg.mxu0
        %629 = vrot.lane.b32.xlu0 %v336, 112
        %v630 = vpop.permute.xlu0 %629
        %v632 = vsel %vm262, %v630, 0.0
        %633 = vadd.xlane.f32.xlu0 %v632
        %v634 = vpop.xlane.xlu0 %633
        %v635 = vrsqrt.pop %v634
        %v636 = vmul.f32 %v634, %v635
        %vm637 = vcmp.eq.f32.partialorder %v634, inf
        %v638 = vsel %vm637, %v634, %v636
        %vm639 = vcmp.eq.f32.partialorder %v634, 0.0
        %v640 = vand.u32 %v634, 2147483648
        %v641 = vsel %vm639, %v640, %v638
        %642 = vxpose.xlu0.b32.start [1/16] %v641, 128
        %643 = vxpose.xlu0.b32.cont [2/16] 0.0, 128
        %644 = vxpose.xlu0.b32.cont [3/16] 0.0, 128
        %645 = vxpose.xlu0.b32.cont [4/16] 0.0, 128
        %646 = vxpose.xlu0.b32.cont [5/16] 0.0, 128
        %647 = vxpose.xlu0.b32.cont [6/16] 0.0, 128
        %648 = vxpose.xlu0.b32.cont [7/16] 0.0, 128
        %649 = vxpose.xlu0.b32.cont [8/16] 0.0, 128
        %650 = vxpose.xlu0.b32.cont [9/16] 0.0, 128
        %651 = vxpose.xlu0.b32.cont [10/16] 0.0, 128
        %652 = vxpose.xlu0.b32.cont [11/16] 0.0, 128
        %653 = vxpose.xlu0.b32.cont [12/16] 0.0, 128
        %654 = vxpose.xlu0.b32.cont [13/16] 0.0, 128
        %655 = vxpose.xlu0.b32.cont [14/16] 0.0, 128
        %656 = vxpose.xlu0.b32.cont [15/16] 0.0, 128
        %657 = vxpose.xlu0.b32.end [16/16] 0.0, 128
        %v658 = vpop.trf.xlu0
        %v659 = vpop.trf.xlu0
        %v660 = vpop.trf.xlu0
        %v661 = vpop.trf.xlu0
        %v662 = vpop.trf.xlu0
        %v663 = vpop.trf.xlu0
        %v664 = vpop.trf.xlu0
        %v665 = vpop.trf.xlu0
        %v666 = vpop.trf.xlu0
        %v667 = vpop.trf.xlu0
        %v668 = vpop.trf.xlu0
        %v669 = vpop.trf.xlu0
        %v670 = vpop.trf.xlu0
        %v671 = vpop.trf.xlu0
        %v672 = vpop.trf.xlu0
        %v673 = vpop.trf.xlu0
        %v674 = vmul.f32 %v626, 2.0
        %v675 = vsub.f32 %v674, %v641
        %v676 = vlaneseq
        %v677 = vshrl.u32 %v676, 7
        %v678 = vsub.s32 0, %v677
        %v679 = vrot.slane %v658, %v678
        %v680 = vsub.f32 %v675, %v679
        %v681 = vmul.f32 %v680, 0.35355338
        %v682 = vsel %vm262, %v681, -inf
        %683 = vmax.xlane.f32.xlu0 %v682
        %v684 = vpop.xlane.xlu0 %683
        %v685 = vsub.f32 %v681, %v684
        %v686 = vmul.f32 %v685, 1.442695
        %v687 = vpow.pop %v686
        %v688 = vld [vmem:[%s182 + $0x2] sm:$0x1]
        %v689 = vlaneseq
        %v690 = vshrl.u32 %v689, 7
        %v691 = vsub.s32 0, %v690
        %v692 = vrot.slane %v688, %v691
        %v693 = vmul.f32 %v687, %v692
        %v694 = vsel %vm262, %v693, 0.0
        %695 = vadd.xlane.f32.xlu0 %v694
        %v696 = vpop.xlane.xlu0 %695
        %v697 = vsel %vm262, %v687, 0.0
        %698 = vadd.xlane.f32.xlu0 %v697
        %v699 = vpop.xlane.xlu0 %698
        %v700 = vrcp.pop %v699
        %v701 = vmul.f32 %v696, %v700
        %702 = vrot.lane.b32.xlu0 %v259, 104
        %v703 = vpop.permute.xlu0 %702
        %v704 = vsel %vm262, %v703, 0
        %706 = vmatprep.subr.mxu0 0.0
        %707 = vmatpush1.xpose.msra.mxu0 %v704
        %708 = vmatprep.subr.mxu0 0.0
        %709 = vmatpush1.xpose.msra.mxu0 0.0
        %710 = vmatprep.subr.mxu0 0.0
        %711 = vmatpush1.xpose.msra.mxu0 0.0
        %712 = vmatprep.subr.mxu0 0.0
        %713 = vmatpush1.xpose.msra.mxu0 0.0
        %714 = vmatprep.subr.mxu0 0.0
        %715 = vmatpush1.xpose.msra.mxu0 0.0
        %716 = vmatprep.subr.mxu0 0.0
        %717 = vmatpush1.xpose.msra.mxu0 0.0
        %718 = vmatprep.subr.mxu0 0.0
        %719 = vmatpush1.xpose.msra.mxu0 0.0
        %720 = vmatprep.subr.mxu0 0.0
        %721 = vmatpush1.xpose.msra.mxu0 0.0
        %722 = vmatprep.subr.mxu0 0.0
        %723 = vmatpush1.xpose.msra.mxu0 0.0
        %724 = vmatprep.subr.mxu0 0.0
        %725 = vmatpush1.xpose.msra.mxu0 0.0
        %726 = vmatprep.subr.mxu0 0.0
        %727 = vmatpush1.xpose.msra.mxu0 0.0
        %728 = vmatprep.subr.mxu0 0.0
        %729 = vmatpush1.xpose.msra.mxu0 0.0
        %730 = vmatprep.subr.mxu0 0.0
        %731 = vmatpush1.xpose.msra.mxu0 0.0
        %732 = vmatprep.subr.mxu0 0.0
        %733 = vmatpush1.xpose.msra.mxu0 0.0
        %734 = vmatprep.subr.mxu0 0.0
        %735 = vmatpush1.xpose.msra.mxu0 0.0
        %736 = vmatprep.subr.mxu0 0.0
        %737 = vmatpush1.xpose.msra.mxu0 0.0
        %738 = vmatprep.subr.mxu0 0.0
        %739 = vmatpush1.xpose.msra.mxu0 0.0
        %740 = vmatprep.subr.mxu0 0.0
        %741 = vmatpush1.xpose.msra.mxu0 0.0
        %742 = vmatprep.subr.mxu0 0.0
        %743 = vmatpush1.xpose.msra.mxu0 0.0
        %744 = vmatprep.subr.mxu0 0.0
        %745 = vmatpush1.xpose.msra.mxu0 0.0
        %746 = vmatprep.subr.mxu0 0.0
        %747 = vmatpush1.xpose.msra.mxu0 0.0
        %748 = vmatprep.subr.mxu0 0.0
        %749 = vmatpush1.xpose.msra.mxu0 0.0
        %750 = vmatprep.subr.mxu0 0.0
        %751 = vmatpush1.xpose.msra.mxu0 0.0
        %752 = vmatprep.subr.mxu0 0.0
        %753 = vmatpush1.xpose.msra.mxu0 0.0
        %754 = vmatprep.subr.mxu0 0.0
        %755 = vmatpush1.xpose.msra.mxu0 0.0
        %756 = vmatprep.subr.mxu0 0.0
        %757 = vmatpush1.xpose.msra.mxu0 0.0
        %758 = vmatprep.subr.mxu0 0.0
        %759 = vmatpush1.xpose.msra.mxu0 0.0
        %760 = vmatprep.subr.mxu0 0.0
        %761 = vmatpush1.xpose.msra.mxu0 0.0
        %762 = vmatprep.subr.mxu0 0.0
        %763 = vmatpush1.xpose.msra.mxu0 0.0
        %764 = vmatprep.subr.mxu0 0.0
        %765 = vmatpush1.xpose.msra.mxu0 0.0
        %766 = vmatprep.subr.mxu0 0.0
        %767 = vmatpush1.xpose.msra.mxu0 0.0
        %768 = vmatprep.subr.mxu0 0.0
        %769 = vmatpush1.xpose.msra.mxu0 0.0
        %770 = vmatprep.mubr.f32.mxu0 0.0
        %771 = vmatmul.mubr.f32.gmra.mrb[0].mxu0 %v704
        %v772 = vpop.f32.mrb[0].mxu0
        %v773 = vadd.f32 0.0, %v772
        %v774 = vpop.f32.mrb[0].mxu0
        %775 = vdwg.mxu0
        %776 = vrot.lane.b32.xlu0 %v336, 104
        %v777 = vpop.permute.xlu0 %776
        %v779 = vsel %vm262, %v777, 0.0
        %780 = vadd.xlane.f32.xlu0 %v779
        %v781 = vpop.xlane.xlu0 %780
        %v782 = vrsqrt.pop %v781
        %v783 = vmul.f32 %v781, %v782
        %vm784 = vcmp.eq.f32.partialorder %v781, inf
        %v785 = vsel %vm784, %v781, %v783
        %vm786 = vcmp.eq.f32.partialorder %v781, 0.0
        %v787 = vand.u32 %v781, 2147483648
        %v788 = vsel %vm786, %v787, %v785
        %789 = vxpose.xlu0.b32.start [1/16] %v788, 128
        %790 = vxpose.xlu0.b32.cont [2/16] 0.0, 128
        %791 = vxpose.xlu0.b32.cont [3/16] 0.0, 128
        %792 = vxpose.xlu0.b32.cont [4/16] 0.0, 128
        %793 = vxpose.xlu0.b32.cont [5/16] 0.0, 128
        %794 = vxpose.xlu0.b32.cont [6/16] 0.0, 128
        %795 = vxpose.xlu0.b32.cont [7/16] 0.0, 128
        %796 = vxpose.xlu0.b32.cont [8/16] 0.0, 128
        %797 = vxpose.xlu0.b32.cont [9/16] 0.0, 128
        %798 = vxpose.xlu0.b32.cont [10/16] 0.0, 128
        %799 = vxpose.xlu0.b32.cont [11/16] 0.0, 128
        %800 = vxpose.xlu0.b32.cont [12/16] 0.0, 128
        %801 = vxpose.xlu0.b32.cont [13/16] 0.0, 128
        %802 = vxpose.xlu0.b32.cont [14/16] 0.0, 128
        %803 = vxpose.xlu0.b32.cont [15/16] 0.0, 128
        %804 = vxpose.xlu0.b32.end [16/16] 0.0, 128
        %v805 = vpop.trf.xlu0
        %v806 = vpop.trf.xlu0
        %v807 = vpop.trf.xlu0
        %v808 = vpop.trf.xlu0
        %v809 = vpop.trf.xlu0
        %v810 = vpop.trf.xlu0
        %v811 = vpop.trf.xlu0
        %v812 = vpop.trf.xlu0
        %v813 = vpop.trf.xlu0
        %v814 = vpop.trf.xlu0
        %v815 = vpop.trf.xlu0
        %v816 = vpop.trf.xlu0
        %v817 = vpop.trf.xlu0
        %v818 = vpop.trf.xlu0
        %v819 = vpop.trf.xlu0
        %v820 = vpop.trf.xlu0
        %v821 = vmul.f32 %v773, 2.0
        %v822 = vsub.f32 %v821, %v788
        %v823 = vlaneseq
        %v824 = vshrl.u32 %v823, 7
        %v825 = vsub.s32 0, %v824
        %v826 = vrot.slane %v805, %v825
        %v827 = vsub.f32 %v822, %v826
        %v828 = vmul.f32 %v827, 0.35355338
        %v829 = vsel %vm262, %v828, -inf
        %830 = vmax.xlane.f32.xlu0 %v829
        %v831 = vpop.xlane.xlu0 %830
        %v832 = vsub.f32 %v828, %v831
        %v833 = vmul.f32 %v832, 1.442695
        %v834 = vpow.pop %v833
        %v835 = vld [vmem:[%s182 + $0x3] sm:$0x1]
        %v836 = vlaneseq
        %v837 = vshrl.u32 %v836, 7
        %v838 = vsub.s32 0, %v837
        %v839 = vrot.slane %v835, %v838
        %v840 = vmul.f32 %v834, %v839
        %v841 = vsel %vm262, %v840, 0.0
        %842 = vadd.xlane.f32.xlu0 %v841
        %v843 = vpop.xlane.xlu0 %842
        %v844 = vsel %vm262, %v834, 0.0
        %845 = vadd.xlane.f32.xlu0 %v844
        %v846 = vpop.xlane.xlu0 %845
        %v847 = vrcp.pop %v846
        %v848 = vmul.f32 %v843, %v847
        %vm849 = vcmask 7168
        %v850 = vsel %vm849, %v406, %v554
        %vm851 = vcmask 15360
        %v852 = vsel %vm851, %v850, %v701
        %vm853 = vcmask 23552
        %v854 = vsel %vm853, %v852, %v848
        %v855 = vxor.u32 %v854, 2147483648
        %v856 = vmul.f32 %v855, 1.442695
        %v857 = vpow.pop %v856
        %v858 = vadd.f32 %v857, 1.0
        %v859 = vrcp.pop %v858
        %v860 = vmul.f32 1.0, %v859
        %861 = vxpose.xlu0.b32.start [1/16] %v860, 128
        %862 = vxpose.xlu0.b32.cont [2/16] 0.0, 128
        %863 = vxpose.xlu0.b32.cont [3/16] 0.0, 128
        %864 = vxpose.xlu0.b32.cont [4/16] 0.0, 128
        %865 = vxpose.xlu0.b32.cont [5/16] 0.0, 128
        %866 = vxpose.xlu0.b32.cont [6/16] 0.0, 128
        %867 = vxpose.xlu0.b32.cont [7/16] 0.0, 128
        %868 = vxpose.xlu0.b32.cont [8/16] 0.0, 128
        %869 = vxpose.xlu0.b32.cont [9/16] 0.0, 128
        %870 = vxpose.xlu0.b32.cont [10/16] 0.0, 128
        %871 = vxpose.xlu0.b32.cont [11/16] 0.0, 128
        %872 = vxpose.xlu0.b32.cont [12/16] 0.0, 128
        %873 = vxpose.xlu0.b32.cont [13/16] 0.0, 128
        %874 = vxpose.xlu0.b32.cont [14/16] 0.0, 128
        %875 = vxpose.xlu0.b32.cont [15/16] 0.0, 128
        %876 = vxpose.xlu0.b32.end [16/16] 0.0, 128
        %v877 = vpop.trf.xlu0
        %v878 = vpop.trf.xlu0
        %v879 = vpop.trf.xlu0
        %v880 = vpop.trf.xlu0
        %v881 = vpop.trf.xlu0
        %v882 = vpop.trf.xlu0
        %v883 = vpop.trf.xlu0
        %v884 = vpop.trf.xlu0
        %v885 = vpop.trf.xlu0
        %v886 = vpop.trf.xlu0
        %v887 = vpop.trf.xlu0
        %v888 = vpop.trf.xlu0
        %v889 = vpop.trf.xlu0
        %v890 = vpop.trf.xlu0
        %v891 = vpop.trf.xlu0
        %v892 = vpop.trf.xlu0
        %vm893 = vcmask 60416
        %894 = vst.msk [vmem:[%s174] sm:$0xf] %vm893, %v877
        %s895 = sand.u32 %s98, 1
        %s896 = scalar_lea.sflag [#allocation3], %s895
        %s897 = sand.u32 %s98, 1
        %s898 = smul.addr %s897, 4
        %s899 = scalar_lea.vmem [#allocation2], %s898
        // Predicated region
        $region33: #{l2mhsa_pallas.1} parent=31 // pred_check
          %p900 = pneg %p108
        $region34: #{l2mhsa_pallas.1} parent=31 // pred_check_branch
          %902 = sbr.rel (%p900) target = $region36
        $region35: #{l2mhsa_pallas.1} parent=31 // pred_region
          %s904 = ssub.s32 64, 64
          %905 = vsyncadd %s896, %s904
          %s906 = smul.addr %s17, 64
          %s907 = scalar_lea.hbm %s3, %s906
          %s909 = sshll.u32 %s899, 4
          %s910 = int_to_ptr.vmem [resolvable:$true] %s909
          %912 = dma.vmem_to_hbm [thread:$0]  %s910, 64, %s907, %s896
        $region36: #{l2mhsa_pallas.1} parent=31 // pred_fallthru
          _
      $region32: #{l2mhsa_pallas.1} parent=5 // pred_fallthru
        _
      %p913 = scmp.le.s32.totalorder 2, %s12
      // Predicated region
      $region37: #{l2mhsa_pallas.1} parent=5 // pred_check
        %p914 = pneg %p913
      $region38: #{l2mhsa_pallas.1} parent=5 // pred_check_branch
        %916 = sbr.rel (%p914) target = $region40
      $region39: #{l2mhsa_pallas.1} parent=5 // pred_region
        %s917 = ssub.s32 %s12, 2
        // Predicated region
        $region41: #{l2mhsa_pallas.1} parent=39 // pred_check
          %p918 = pneg %p114
        $region42: #{l2mhsa_pallas.1} parent=39 // pred_check_branch
          %920 = sbr.rel (%p918) target = $region44
        $region43: #{l2mhsa_pallas.1} parent=39 // pred_region
          %s921 = sand.u32 %s99, 1
          %s922 = scalar_lea.sflag [#allocation3], %s921
          %s923 = sand.u32 %s99, 1
          %s924 = smul.addr %s923, 4
          %s925 = scalar_lea.vmem [#allocation2], %s924
          %926 = dma.done %s922, 64
        $region44: #{l2mhsa_pallas.1} parent=39 // pred_fallthru
          _
      $region40: #{l2mhsa_pallas.1} parent=5 // pred_fallthru
        _
    $region6: #{l2mhsa_pallas.1} parent=1 // loop_footer
      %s16 = sadd.s32 1, %s12
    $region7: #{l2mhsa_pallas.1} parent=1 // loop_footer_branch
      %11 = sbr.rel target = $region3
    $region8: #{l2mhsa_pallas.1} parent=1 // loop_exit
      _
    %927 = vsyncpa [#allocation3], 1
    %s928 = scalar_lea.sflag [#allocation3], 1
    %929 = vsyncpa %s928, 1

</llo_original>
